<compile_context>
chip_gen: v6e
topology: v6e:2x2x1
jax: 0.10.0
libtpu: 0.0.40
codegen_flags: <defaults>
</compile_context>

<pallas_src>
import jax
import jax.numpy as jnp
from jax.experimental import pallas as pl
from jax.experimental.pallas import tpu as pltpu


def _round_up(x: int, m: int) -> int:
    return ((x + m - 1) // m) * m


def _fused_mlp_kernel(x_ref, w1_ref, b1_ref, w2_ref, b2_ref, o_ref):
    """relu(relu(x @ W1 + b1) @ W2 + b2) for one batch tile.

    x / W* are bf16 (MXU operands); accumulation + bias/ReLU math in f32.
    """
    h = jnp.dot(x_ref[...], w1_ref[...], preferred_element_type=jnp.float32)
    h = jnp.maximum(h + b1_ref[...], 0.0)          # (1, d1) f32 bias broadcasts
    h = h.astype(w2_ref.dtype)                      # bf16 for the second MXU pass
    y = jnp.dot(h, w2_ref[...], preferred_element_type=jnp.float32)
    y = jnp.maximum(y + b2_ref[...], 0.0)
    o_ref[...] = y.astype(o_ref.dtype)


def _choose_batch_tile(B: int) -> int:
    """Batch tile: multiple of 8 sublanes, big (low per-step overhead), but
    keep >= 2 grid blocks when possible so v7x's 2 TCs both get work."""
    if B <= 8:
        return B                                    # full-array block (legal)
    tb = min(1024, _round_up(B, 8))
    tb = min(tb, max(8, _round_up(-(-B // 2), 8)))  # >= 2 blocks
    return tb


def mlp_forward_pallas(x, w1, b1, w2, b2):
    """x: [B, 2E] bf16. Returns [B, d2] float32 (exact width, no padding)."""
    B, K = x.shape
    d1 = w1.shape[1]
    d2 = w2.shape[1]

    TB = _choose_batch_tile(B)
    grid = (pl.cdiv(B, TB),)                        # partial last block masked by Pallas

    bytes_accessed = (
        B * K * 2                                   # activation in (bf16)
        + B * d2 * 4                                # output (f32, exact width)
        + (K * d1 + d1 * d2) * 2                    # weights (bf16, resident)
        + (d1 + d2) * 4                             # biases (f32)
    )
    flops = 2 * B * (K * d1 + d1 * d2)

    return pl.pallas_call(
        _fused_mlp_kernel,
        out_shape=jax.ShapeDtypeStruct((B, d2), jnp.float32),
        grid=grid,
        in_specs=[
            pl.BlockSpec((TB, K), lambda i: (i, 0)),     # activation tile
            pl.BlockSpec((K, d1), lambda i: (0, 0)),     # weights stay resident
            pl.BlockSpec((1, d1), lambda i: (0, 0)),
            pl.BlockSpec((d1, d2), lambda i: (0, 0)),
            pl.BlockSpec((1, d2), lambda i: (0, 0)),
        ],
        out_specs=pl.BlockSpec((TB, d2), lambda i: (i, 0)),
        compiler_params=pltpu.CompilerParams(
            dimension_semantics=("parallel",)),
        cost_estimate=pl.CostEstimate(
            flops=flops, transcendentals=0, bytes_accessed=bytes_accessed),
    )(x, w1, b1, w2, b2)


class CustomerRestaurantInteractionPallas:
    """JAX/Pallas port of CustomerRestaurantInteractionModule (2-layer MLP)."""

    def __init__(self, num_users, num_businesses, embedding_dim, mlp_dims, key):
        assert len(mlp_dims) == 2, "this port fuses exactly two Linear+ReLU layers"
        E = embedding_dim
        d1, d2 = mlp_dims
        self.embedding_dim = E
        self.output_dim = d2

        k = jax.random.split(key, 6)
        # Embedding tables in bf16 (halves gather HBM traffic; bf16 MXU operands).
        self.user_embedding = jax.random.normal(
            k[0], (num_users, E), jnp.float32).astype(jnp.bfloat16)
        self.business_embedding = jax.random.normal(
            k[1], (num_businesses, E), jnp.float32).astype(jnp.bfloat16)

        # Deterministic synthetic parameters (scaled like typical init).
        w1 = jax.random.normal(k[2], (2 * E, d1), jnp.float32) * (1.0 / jnp.sqrt(2 * E))
        b1 = jax.random.normal(k[3], (1, d1), jnp.float32) * 0.01
        w2 = jax.random.normal(k[4], (d1, d2), jnp.float32) * (1.0 / jnp.sqrt(d1))
        b2 = jax.random.normal(k[5], (1, d2), jnp.float32) * 0.01

        # Weights in bf16 (MXU), biases in f32 (VPU math stays f32). No feature
        # padding: all weight/bias blocks equal their full array shapes.
        self.w1 = w1.astype(jnp.bfloat16)            # (2E, d1)
        self.b1 = b1                                  # (1, d1) f32
        self.w2 = w2.astype(jnp.bfloat16)            # (d1, d2)
        self.b2 = b2                                  # (1, d2) f32

    def __call__(self, user_ids, business_ids):
        # Embedding lookup (gather) + concat: plain JAX glue; the two takes and
        # the concat fuse into one XLA fusion writing a single [B, 2E] buffer.
        u = jnp.take(self.user_embedding, user_ids, axis=0)            # [B, E] bf16
        bz = jnp.take(self.business_embedding, business_ids, axis=0)   # [B, E] bf16
        x = jnp.concatenate([u, bz], axis=1)                           # [B, 2E] bf16
        return mlp_forward_pallas(x, self.w1, self.b1, self.w2, self.b2)


def _reference_forward(mod, user_ids, business_ids):
    """Pure-JAX reference (same bf16 operand rounding, f32 accumulation)."""
    u = jnp.take(mod.user_embedding, user_ids, axis=0).astype(jnp.float32)
    bz = jnp.take(mod.business_embedding, business_ids, axis=0).astype(jnp.float32)
    x = jnp.concatenate([u, bz], axis=1)
    h = jnp.maximum(x @ mod.w1.astype(jnp.float32) + mod.b1, 0.0)
    h = h.astype(jnp.bfloat16).astype(jnp.float32)
    y = jnp.maximum(h @ mod.w2.astype(jnp.float32) + mod.b2, 0.0)
    return y


if __name__ == "__main__":
    key = jax.random.PRNGKey(0)
    kp, ku, kb = jax.random.split(key, 3)

    num_users = 100
    num_businesses = 50
    embedding_dim = 32
    mlp_dims = [64, 32]
    batch = 8

    module = CustomerRestaurantInteractionPallas(
        num_users, num_businesses, embedding_dim, mlp_dims, kp)

    user_ids = jax.random.randint(ku, (batch,), 0, num_users, dtype=jnp.int32)
    business_ids = jax.random.randint(kb, (batch,), 0, num_businesses, dtype=jnp.int32)

    out = module(user_ids, business_ids)
    out = jax.block_until_ready(out)

    ref = _reference_forward(module, user_ids, business_ids)
    assert out.shape == (batch, mlp_dims[-1]), out.shape
    assert jnp.allclose(out, ref, atol=2e-3, rtol=2e-3), float(jnp.max(jnp.abs(out - ref)))

    print("KERNEL_OK")
</pallas_src>

<mosaic_0001>
module attributes {stable_mosaic.version = 11 : i64} {
  func.func @_fused_mlp_kernel(%arg0: i32, %arg1: memref<8x64xbf16, #tpu.memory_space<vmem>>, %arg2: memref<64x64xbf16, #tpu.memory_space<vmem>>, %arg3: memref<1x64xf32, #tpu.memory_space<vmem>>, %arg4: memref<64x32xbf16, #tpu.memory_space<vmem>>, %arg5: memref<1x32xf32, #tpu.memory_space<vmem>>, %arg6: memref<8x32xf32, #tpu.memory_space<vmem>>) attributes {dimension_semantics = [#tpu.dimension_semantics<parallel>], iteration_bounds = array<i64: 1>, scalar_prefetch = 0 : i64, scratch_operands = 0 : i64, tpu.core_type = #tpu.core_type<tc>, window_params = [{transform_indices = @transform_0, window_bounds = array<i64: 8, 64>}, {pipeline_mode = #tpu.pipeline_mode<synchronous>, transform_indices = @transform_1, window_bounds = array<i64: 64, 64>}, {pipeline_mode = #tpu.pipeline_mode<synchronous>, transform_indices = @transform_2, window_bounds = array<i64: 1, 64>}, {pipeline_mode = #tpu.pipeline_mode<synchronous>, transform_indices = @transform_3, window_bounds = array<i64: 64, 32>}, {pipeline_mode = #tpu.pipeline_mode<synchronous>, transform_indices = @transform_4, window_bounds = array<i64: 1, 32>}, {transform_indices = @transform_5, window_bounds = array<i64: 8, 32>}]} {
    %c0 = arith.constant 0 : index
    %c0_0 = arith.constant 0 : index
    %0 = vector.load %arg1[%c0, %c0_0] : memref<8x64xbf16, #tpu.memory_space<vmem>>, vector<8x64xbf16>
    %c0_1 = arith.constant 0 : index
    %c0_2 = arith.constant 0 : index
    %1 = vector.load %arg2[%c0_1, %c0_2] : memref<64x64xbf16, #tpu.memory_space<vmem>>, vector<64x64xbf16>
    %cst = arith.constant dense<0.000000e+00> : vector<8x64xf32>
    %2 = tpu.matmul %0, %1, %cst {dimension_numbers = #tpu.dot_dimension_numbers<[1], [0], [0], [1], [0, 0, 1, 1], [], []>} : vector<8x64xbf16>, vector<64x64xbf16>, vector<8x64xf32> -> vector<8x64xf32>
    %c0_3 = arith.constant 0 : index
    %c0_4 = arith.constant 0 : index
    %3 = vector.load %arg3[%c0_3, %c0_4] : memref<1x64xf32, #tpu.memory_space<vmem>>, vector<1x64xf32>
    %4 = vector.broadcast %3 : vector<1x64xf32> to vector<8x64xf32>
    %5 = arith.addf %2, %4 : vector<8x64xf32>
    %cst_5 = arith.constant 0.000000e+00 : f32
    %6 = vector.broadcast %cst_5 : f32 to vector<8x64xf32>
    %7 = arith.maximumf %5, %6 : vector<8x64xf32>
    %8 = arith.truncf %7 : vector<8x64xf32> to vector<8x64xbf16>
    %c0_6 = arith.constant 0 : index
    %c0_7 = arith.constant 0 : index
    %9 = vector.load %arg4[%c0_6, %c0_7] : memref<64x32xbf16, #tpu.memory_space<vmem>>, vector<64x32xbf16>
    %cst_8 = arith.constant dense<0.000000e+00> : vector<8x32xf32>
    %10 = tpu.matmul %8, %9, %cst_8 {dimension_numbers = #tpu.dot_dimension_numbers<[1], [0], [0], [1], [0, 0, 1, 1], [], []>} : vector<8x64xbf16>, vector<64x32xbf16>, vector<8x32xf32> -> vector<8x32xf32>
    %c0_9 = arith.constant 0 : index
    %c0_10 = arith.constant 0 : index
    %11 = vector.load %arg5[%c0_9, %c0_10] : memref<1x32xf32, #tpu.memory_space<vmem>>, vector<1x32xf32>
    %12 = vector.broadcast %11 : vector<1x32xf32> to vector<8x32xf32>
    %13 = arith.addf %10, %12 : vector<8x32xf32>
    %cst_11 = arith.constant 0.000000e+00 : f32
    %14 = vector.broadcast %cst_11 : f32 to vector<8x32xf32>
    %15 = arith.maximumf %13, %14 : vector<8x32xf32>
    %c0_12 = arith.constant 0 : index
    %c0_13 = arith.constant 0 : index
    %16 = vector.load %arg6[%c0_12, %c0_13] : memref<8x32xf32, #tpu.memory_space<vmem>>, vector<8x32xf32>
    tpu.vector_store %arg6[%c0_12, %c0_13], %15 {strides = array<i32>} : memref<8x32xf32, #tpu.memory_space<vmem>>, vector<8x32xf32>,
    return
  }
  func.func @transform_0(%arg0: i32) -> (i32, i32) {
    %c0_i32 = arith.constant 0 : i32
    %c0_i32_0 = arith.constant 0 : i32
    return %arg0, %c0_i32 : i32, i32
  }
  func.func @transform_1(%arg0: i32) -> (i32, i32) {
    %c0_i32 = arith.constant 0 : i32
    %c0_i32_0 = arith.constant 0 : i32
    %c0_i32_1 = arith.constant 0 : i32
    return %c0_i32, %c0_i32_0 : i32, i32
  }
  func.func @transform_2(%arg0: i32) -> (i32, i32) {
    %c0_i32 = arith.constant 0 : i32
    %c0_i32_0 = arith.constant 0 : i32
    %c0_i32_1 = arith.constant 0 : i32
    return %c0_i32, %c0_i32_0 : i32, i32
  }
  func.func @transform_3(%arg0: i32) -> (i32, i32) {
    %c0_i32 = arith.constant 0 : i32
    %c0_i32_0 = arith.constant 0 : i32
    %c0_i32_1 = arith.constant 0 : i32
    return %c0_i32, %c0_i32_0 : i32, i32
  }
  func.func @transform_4(%arg0: i32) -> (i32, i32) {
    %c0_i32 = arith.constant 0 : i32
    %c0_i32_0 = arith.constant 0 : i32
    %c0_i32_1 = arith.constant 0 : i32
    return %c0_i32, %c0_i32_0 : i32, i32
  }
  func.func @transform_5(%arg0: i32) -> (i32, i32) {
    %c0_i32 = arith.constant 0 : i32
    %c0_i32_0 = arith.constant 0 : i32
    return %arg0, %c0_i32 : i32, i32
  }
}

</mosaic_0001>

<llo_original>
// kernel: tpu_custom_call.1
$region0: #{tpu_custom_call.1}
  #allocation0 [shape = 'u32[]', space=smem, size = 0x4, offset = 0x4, fixed_abs, tag = 'smem constant byte address 0x4 - core index']
  #allocation1 [shape = 'u32[144,128]{1,0:T(1,128)}', space=vmem, size = 0x12000, scoped, tag = 'internal scratch']
  %s0 = inlined_call_operand.vmem [shape: bf16[8,64], index: 0, kind: input, shape index: {}]
  %s1 = inlined_call_operand.vmem [shape: bf16[64,64], index: 1, kind: input, shape index: {}]
  %s2 = inlined_call_operand.vmem [shape: f32[1,64], index: 2, kind: input, shape index: {}]
  %s3 = inlined_call_operand.vmem [shape: bf16[64,32], index: 3, kind: input, shape index: {}]
  %s4 = inlined_call_operand.vmem [shape: f32[1,32], index: 4, kind: input, shape index: {}]
  %s5 = inlined_call_operand.hbm [shape: f32[8,32], index: 5, kind: output, shape index: {}]
  %s6 = sld [smem:[#allocation0]]
  $region30: #{tpu_custom_call.1} parent=0
    _
  %s8 = ssub.s32 1, %s6
  %s9 = scalar_select 0, %s8, %s6
  $region1: #{tpu_custom_call.1} parent=0
    #allocation2 [shape = 'u8[4096]{0}', space=vmem, size = 0x1000, scoped, tag = 'output window, operand 0, single buffered']
    #allocation3 [shape = 's32[1]{0}', space=sflag, size = 0x4, scoped, tag = 'scoped memory for tpu_custom_call.1']
    %10 = vsyncpa [#allocation3], 0
    // Predicated region
    $region2: #{tpu_custom_call.1} parent=1 // pred_check
      _
    $region3: #{tpu_custom_call.1} parent=1 // pred_check_branch
      %12 = sbr.rel (0) target = $region5
    $region4: #{tpu_custom_call.1} parent=1 // pred_region
      _
    $region5: #{tpu_custom_call.1} parent=1 // pred_fallthru
      _
    // Predicated region
    $region6: #{tpu_custom_call.1} parent=1 // pred_check
      _
    $region7: #{tpu_custom_call.1} parent=1 // pred_check_branch
      %14 = sbr.rel (0) target = $region9
    $region8: #{tpu_custom_call.1} parent=1 // pred_region
      _
    $region9: #{tpu_custom_call.1} parent=1 // pred_fallthru
      _
    // Predicated region
    $region10: #{tpu_custom_call.1} parent=1 // pred_check
      _
    $region11: #{tpu_custom_call.1} parent=1 // pred_check_branch
      %16 = sbr.rel (0) target = $region13
    $region12: #{tpu_custom_call.1} parent=1 // pred_region
      _
    $region13: #{tpu_custom_call.1} parent=1 // pred_fallthru
      _
    // Predicated region
    $region14: #{tpu_custom_call.1} parent=1 // pred_check
      _
    $region15: #{tpu_custom_call.1} parent=1 // pred_check_branch
      %18 = sbr.rel (0) target = $region17
    $region16: #{tpu_custom_call.1} parent=1 // pred_region
      _
    $region17: #{tpu_custom_call.1} parent=1 // pred_fallthru
      _
    // Predicated region
    $region18: #{tpu_custom_call.1} parent=1 // pred_check
      _
    $region19: #{tpu_custom_call.1} parent=1 // pred_check_branch
      %20 = sbr.rel (0) target = $region21
    $region20: #{tpu_custom_call.1} parent=1 // pred_region
      _
    $region21: #{tpu_custom_call.1} parent=1 // pred_fallthru
      _
    %v22 = vld [vmem:[%s0] sm:$0xf]
    %v23 = vld [vmem:[%s1] sm:$0xf]
    %v24 = vld [vmem:[%s1 + $0x4] sm:$0xf]
    %v25 = vld [vmem:[%s1 + $0x8] sm:$0xf]
    %v26 = vld [vmem:[%s1 + $0xc] sm:$0xf]
    %v27 = vld [vmem:[%s1 + $0x10] sm:$0xf]
    %v28 = vld [vmem:[%s1 + $0x14] sm:$0xf]
    %v29 = vld [vmem:[%s1 + $0x18] sm:$0xf]
    %v30 = vld [vmem:[%s1 + $0x1c] sm:$0xf]
    %v31 = vld [vmem:[%s2] sm:$0x1]
    %v33 = vlaneseq
    %v34 = vshrl.u32 %v33, 7
    %v35 = vsub.s32 0, %v34
    %v36 = vrot.slane %v31, %v35
    %v46 = vunpack.c.l.b16 %v23
    %v47 = vunpack.c.l.b16 %v24
    %v48 = vunpack.c.l.b16 %v25
    %v49 = vunpack.c.l.b16 %v26
    %v50 = vunpack.c.l.b16 %v27
    %v51 = vunpack.c.l.b16 %v28
    %v52 = vunpack.c.l.b16 %v29
    %v53 = vunpack.c.l.b16 %v30
    %v54 = vpack.c.b16 %v47, %v46
    %v55 = vpack.c.b16 %v49, %v48
    %v56 = vpack.c.b16 %v51, %v50
    %v57 = vpack.c.b16 %v53, %v52
    %vm62 = vcmask 523264
    %v64 = vsel %vm62, %v22, 0
    %66 = vmatprep.subr.bf16.mxu0 0
    %67 = vmatpush1.bf16.msra.mxu0 0
    %68 = vmatprep.subr.bf16.mxu0 0
    %69 = vmatpush1.bf16.msra.mxu0 0
    %70 = vmatprep.subr.bf16.mxu0 0
    %71 = vmatpush1.bf16.msra.mxu0 0
    %72 = vmatprep.subr.bf16.mxu0 0
    %73 = vmatpush1.bf16.msra.mxu0 0
    %74 = vmatprep.subr.bf16.mxu0 0
    %75 = vmatpush1.bf16.msra.mxu0 %v57
    %76 = vmatprep.subr.bf16.mxu0 0
    %77 = vmatpush1.bf16.msra.mxu0 %v56
    %78 = vmatprep.subr.bf16.mxu0 0
    %79 = vmatpush1.bf16.msra.mxu0 %v55
    %80 = vmatprep.subr.bf16.mxu0 0
    %81 = vmatpush1.bf16.msra.mxu0 %v54
    %82 = vmatprep.subr.bf16.mxu0 0
    %83 = vmatpush2.bf16.msra.mxu0 0
    %84 = vmatprep.subr.bf16.mxu0 0
    %85 = vmatpush2.bf16.msra.mxu0 0
    %86 = vmatprep.subr.bf16.mxu0 0
    %87 = vmatpush2.bf16.msra.mxu0 0
    %88 = vmatprep.subr.bf16.mxu0 0
    %89 = vmatpush2.bf16.msra.mxu0 0
    %90 = vmatprep.subr.bf16.mxu0 0
    %91 = vmatpush2.bf16.msra.mxu0 0
    %92 = vmatprep.subr.bf16.mxu0 0
    %93 = vmatpush2.bf16.msra.mxu0 0
    %94 = vmatprep.subr.bf16.mxu0 0
    %95 = vmatpush2.bf16.msra.mxu0 0
    %96 = vmatprep.subr.bf16.mxu0 0
    %97 = vmatpush2.bf16.msra.mxu0 0
    %98 = vmatprep.mubr.bf16.mxu0 0
    %99 = vmatmul.mubr.bf16.gmra.mxu0 %v64
    %v100 = vpop.f32.mrf.mxu0
    %v101 = vadd.f32 %v36, %v100
    %v102 = vpop.f32.mrf.mxu0
    %v103 = vpop.f32.mrf.mxu0
    %v104 = vpop.f32.mrf.mxu0
    %105 = vdwg.mxu0
    %v106 = vmax.f32 %v101, 0.0
    %v107 = vpack.c.bf16 %v106, %v106
    %v108 = vld [vmem:[%s3] sm:$0xf]
    %v109 = vld [vmem:[%s3 + $0x4] sm:$0xf]
    %v110 = vld [vmem:[%s3 + $0x8] sm:$0xf]
    %v111 = vld [vmem:[%s3 + $0xc] sm:$0xf]
    %v112 = vld [vmem:[%s3 + $0x10] sm:$0xf]
    %v113 = vld [vmem:[%s3 + $0x14] sm:$0xf]
    %v114 = vld [vmem:[%s3 + $0x18] sm:$0xf]
    %v115 = vld [vmem:[%s3 + $0x1c] sm:$0xf]
    %v116 = vld [vmem:[%s4] sm:$0x1]
    %v118 = vlaneseq
    %v119 = vshrl.u32 %v118, 7
    %v120 = vsub.s32 0, %v119
    %v121 = vrot.slane %v116, %v120
    %v131 = vunpack.c.l.b16 %v108
    %v132 = vunpack.c.l.b16 %v109
    %v133 = vunpack.c.l.b16 %v110
    %v134 = vunpack.c.l.b16 %v111
    %v135 = vunpack.c.l.b16 %v112
    %v136 = vunpack.c.l.b16 %v113
    %v137 = vunpack.c.l.b16 %v114
    %v138 = vunpack.c.l.b16 %v115
    %v139 = vpack.c.b16 %v132, %v131
    %v140 = vpack.c.b16 %v134, %v133
    %v141 = vpack.c.b16 %v136, %v135
    %v142 = vpack.c.b16 %v138, %v137
    %v148 = vsel %vm62, %v107, 0
    %150 = vmatprep.subr.bf16.mxu0 0
    %151 = vmatpush1.bf16.msra.mxu0 0
    %152 = vmatprep.subr.bf16.mxu0 0
    %153 = vmatpush1.bf16.msra.mxu0 0
    %154 = vmatprep.subr.bf16.mxu0 0
    %155 = vmatpush1.bf16.msra.mxu0 0
    %156 = vmatprep.subr.bf16.mxu0 0
    %157 = vmatpush1.bf16.msra.mxu0 0
    %158 = vmatprep.subr.bf16.mxu0 0
    %159 = vmatpush1.bf16.msra.mxu0 %v142
    %160 = vmatprep.subr.bf16.mxu0 0
    %161 = vmatpush1.bf16.msra.mxu0 %v141
    %162 = vmatprep.subr.bf16.mxu0 0
    %163 = vmatpush1.bf16.msra.mxu0 %v140
    %164 = vmatprep.subr.bf16.mxu0 0
    %165 = vmatpush1.bf16.msra.mxu0 %v139
    %166 = vmatprep.subr.bf16.mxu0 0
    %167 = vmatpush2.bf16.msra.mxu0 0
    %168 = vmatprep.subr.bf16.mxu0 0
    %169 = vmatpush2.bf16.msra.mxu0 0
    %170 = vmatprep.subr.bf16.mxu0 0
    %171 = vmatpush2.bf16.msra.mxu0 0
    %172 = vmatprep.subr.bf16.mxu0 0
    %173 = vmatpush2.bf16.msra.mxu0 0
    %174 = vmatprep.subr.bf16.mxu0 0
    %175 = vmatpush2.bf16.msra.mxu0 0
    %176 = vmatprep.subr.bf16.mxu0 0
    %177 = vmatpush2.bf16.msra.mxu0 0
    %178 = vmatprep.subr.bf16.mxu0 0
    %179 = vmatpush2.bf16.msra.mxu0 0
    %180 = vmatprep.subr.bf16.mxu0 0
    %181 = vmatpush2.bf16.msra.mxu0 0
    %182 = vmatprep.mubr.bf16.mxu0 0
    %183 = vmatmul.mubr.bf16.gmra.mxu0 %v148
    %v184 = vpop.f32.mrf.mxu0
    %v185 = vadd.f32 %v121, %v184
    %v186 = vpop.f32.mrf.mxu0
    %v187 = vpop.f32.mrf.mxu0
    %v188 = vpop.f32.mrf.mxu0
    %189 = vdwg.mxu0
    %v190 = vmax.f32 %v185, 0.0
    %vm191 = vcmask 261120
    %192 = vst.msk [vmem:[#allocation2] sm:$0xff] %vm191, %v190
    // Predicated region
    $region22: #{tpu_custom_call.1} parent=1 // pred_check
      _
    $region23: #{tpu_custom_call.1} parent=1 // pred_check_branch
      %194 = sbr.rel (0) target = $region25
    $region24: #{tpu_custom_call.1} parent=1 // pred_region
      %s196 = ssub.s32 128, 128
      %197 = vsyncadd [#allocation3], %s196
      %s199 = sshll.u32 [#allocation2], 4
      %s200 = int_to_ptr.vmem [resolvable:$true] %s199
      %202 = dma.vmem_to_hbm [thread:$0]  %s200, 128, %s5, [#allocation3]
    $region25: #{tpu_custom_call.1} parent=1 // pred_fallthru
      _
    // Predicated region
    $region26: #{tpu_custom_call.1} parent=1 // pred_check
      _
    $region27: #{tpu_custom_call.1} parent=1 // pred_check_branch
      %204 = sbr.rel (0) target = $region29
    $region28: #{tpu_custom_call.1} parent=1 // pred_region
      %205 = dma.done [#allocation3], 128
    $region29: #{tpu_custom_call.1} parent=1 // pred_fallthru
      _
    %206 = vsyncpa [#allocation3], 1

</llo_original>
